<compile_context>
chip_gen: v7x
topology: tpu7x:2x2x1
jax: 0.10.0
libtpu: 0.0.40
codegen_flags: <defaults>
</compile_context>

<pallas_src>
import math

import jax
import jax.numpy as jnp
from jax.experimental import pallas as pl
from jax.experimental.pallas import tpu as pltpu

LANE = 128


def _round_up(x, m):
    return ((x + m - 1) // m) * m


# ----------------------------------------------------------------------------
# Pallas kernel: one batch tile through the whole fused actor-critic MLP.
# ----------------------------------------------------------------------------
def _policy_kernel(
    x_ref,                               # (TILE_B, S)   bf16
    w_feat_ref, b_feat_ref,              # (S, 2H) bf16, (1, 2H) f32
    w_hid_ref, b_hid_ref,                # (2H, 2H) bf16, (1, 2H) f32
    w_out_ref, b_out_ref,                # (2H, P) bf16, (1, P) f32
    center_ref, half_ref, vmask_ref,     # (1, P) f32 action-scale / value mask
    out_ref,                             # (TILE_B, P) f32 lane-dense slab
):
    x = x_ref[...]

    # Fused feature extractors: feat = [feat_v | feat_pi]  (TILE_B, 2H), f32.
    feat = jnp.tanh(
        jnp.dot(x, w_feat_ref[...], preferred_element_type=jnp.float32)
        + b_feat_ref[...]
    )

    # Fused hidden layer (block-diagonal): hid = [h_c | h_a]  (TILE_B, 2H).
    hid = jnp.tanh(
        jnp.dot(feat.astype(jnp.bfloat16), w_hid_ref[...],
                preferred_element_type=jnp.float32)
        + b_hid_ref[...]
    )

    # Fused output layer into a lane-dense slab:
    #   cols [0:A] : actor pre-tanh logits (h_a @ Wa2 + ba2)
    #   col  A     : value                 (h_c @ Wc2 + bc2)
    #   cols > A   : exact zeros (padding)
    raw = (
        jnp.dot(hid.astype(jnp.bfloat16), w_out_ref[...],
                preferred_element_type=jnp.float32)
        + b_out_ref[...]
    )

    # scale_actions epilogue via precomputed constants:
    #   mu cols   : center + half * tanh(raw)      (center/half != 0 only there)
    #   value col : raw                            (vmask == 1 only there)
    #   padding   : 0                              (everything zero there)
    # TODO(synk): `scale_actions` is not defined in the source file; standard
    #             gym.Box rescaling (low + 0.5*(a+1)*(high-low)) is assumed.
    out_ref[...] = (
        center_ref[...] + half_ref[...] * jnp.tanh(raw) + vmask_ref[...] * raw
    ).astype(out_ref.dtype)


# ----------------------------------------------------------------------------
# Wrapper: batch-tiled grid, resident weights, lane-dense packed output.
# ----------------------------------------------------------------------------
@jax.jit
def actor_critic_forward(x, packed):
    batch, state = x.shape
    n_actions = packed["log_std"].shape[-1]
    out_pad = packed["w_out"].shape[-1]
    hid2 = packed["w_hid"].shape[-1]          # 2 * hidden_size

    # Sublane alignment only (<= 7 extra rows); the expensive pad-to-tile copy
    # of x is avoided by letting the grid carry a partial final block.
    b8 = _round_up(batch, 8)
    xb = x.astype(jnp.bfloat16)
    if b8 != batch:
        xb = jnp.pad(xb, ((0, b8 - batch), (0, 0)))

    # Large batch tile to amortize per-grid-step overhead (~0.35 us/step).
    # VMEM at tile_b=2048: x tile 64 KiB (bf16) + two (2048, 2H) f32
    # intermediates ~4 MiB + slab 1 MiB + weights <0.5 MiB — far under limits.
    tile_b = min(2048, b8)
    grid_b = pl.cdiv(b8, tile_b)
    # v7x megacore: a 1-step grid would leave one TensorCore idle; split into
    # two steps when the batch is big enough (negligible cost on 1-TC chips).
    if grid_b == 1 and b8 >= 16:
        tile_b = _round_up(pl.cdiv(b8, 2), 8)
        grid_b = pl.cdiv(b8, tile_b)

    cost = pl.CostEstimate(
        flops=2 * batch * (state * hid2 + hid2 * hid2 + hid2 * out_pad),
        transcendentals=batch * (2 * hid2 + out_pad),
        bytes_accessed=(batch * (state * 2 + out_pad * 4)
                        + 2 * (state * hid2 + hid2 * hid2 + hid2 * out_pad)
                        + 4 * (2 * hid2 + 5 * out_pad)),
    )

    const2d = lambda i: (0, 0)
    batch_map = lambda i: (i, 0)

    # NOTE: constant-index_map weight operands could take
    # pipeline_mode=pl.Buffered(1) to drop their dead second buffer; skipped
    # here since the whole resident set is <0.5 MiB at hidden_size=128.
    slab = pl.pallas_call(
        _policy_kernel,
        out_shape=jax.ShapeDtypeStruct((b8, out_pad), jnp.float32),
        grid=(grid_b,),
        in_specs=[
            pl.BlockSpec((tile_b, state), batch_map),
            pl.BlockSpec(packed["w_feat"].shape, const2d),
            pl.BlockSpec(packed["b_feat"].shape, const2d),
            pl.BlockSpec(packed["w_hid"].shape, const2d),
            pl.BlockSpec(packed["b_hid"].shape, const2d),
            pl.BlockSpec(packed["w_out"].shape, const2d),
            pl.BlockSpec(packed["b_out"].shape, const2d),
            pl.BlockSpec(packed["center"].shape, const2d),
            pl.BlockSpec(packed["half"].shape, const2d),
            pl.BlockSpec(packed["vmask"].shape, const2d),
        ],
        out_specs=pl.BlockSpec((tile_b, out_pad), batch_map),
        compiler_params=pltpu.CompilerParams(
            dimension_semantics=("parallel",),
            vmem_limit_bytes=32 * 1024 * 1024,
        ),
        cost_estimate=cost,
    )(
        xb,
        packed["w_feat"], packed["b_feat"],
        packed["w_hid"], packed["b_hid"],
        packed["w_out"], packed["b_out"],
        packed["center"], packed["half"], packed["vmask"],
    )

    mu = slab[:batch, :n_actions]
    value = slab[:batch, n_actions:n_actions + 1]
    # std is x-independent: compute outside the kernel (expand_as(mu)).
    std = jnp.broadcast_to(jnp.exp(packed["log_std"]), mu.shape)
    return mu, std, value


# ----------------------------------------------------------------------------
# Parameter construction (mirrors ActorCriticPolicy.__init__) and packing.
# ----------------------------------------------------------------------------
def _orthogonal(key, shape, gain):
    # Orthogonal init via QR, matching nn.init.orthogonal_ semantics closely
    # enough for a synthetic kernel; returned as [in, out] (pre-transposed).
    out_f, in_f = shape  # torch Linear weight shape
    a = jax.random.normal(key, (max(out_f, in_f), min(out_f, in_f)), jnp.float32)
    q, r = jnp.linalg.qr(a)
    q = q * jnp.sign(jnp.diag(r))
    if out_f < in_f:
        q = q.T
    w = gain * q[:out_f, :in_f]          # torch layout [out, in]
    return w.T.astype(jnp.float32)       # kernel layout [in, out]


def make_params(state_size, hidden_size, n_actions, init_std=1.0, seed=0):
    keys = jax.random.split(jax.random.PRNGKey(seed), 8)
    fe_gain = 1.0
    return dict(
        wv=_orthogonal(keys[0], (hidden_size, state_size), fe_gain),
        bv=jnp.zeros((1, hidden_size), jnp.float32),
        wpi=_orthogonal(keys[1], (hidden_size, state_size), fe_gain),
        bpi=jnp.zeros((1, hidden_size), jnp.float32),
        # actor_head: orthogonal gain 0.01, zero bias (init_weights)
        wa1=_orthogonal(keys[2], (hidden_size, hidden_size), 0.01),
        ba1=jnp.zeros((1, hidden_size), jnp.float32),
        wa2=_orthogonal(keys[3], (n_actions, hidden_size), 0.01),
        ba2=jnp.zeros((1, n_actions), jnp.float32),
        # critic_head: orthogonal gain 1.0, zero bias (init_weights)
        wc1=_orthogonal(keys[4], (hidden_size, hidden_size), 1.0),
        bc1=jnp.zeros((1, hidden_size), jnp.float32),
        wc2=_orthogonal(keys[5], (1, hidden_size), 1.0),
        bc2=jnp.zeros((1, 1), jnp.float32),
        log_std=jnp.full((1, n_actions), math.log(init_std), jnp.float32),
        # action_space bounds (Box(-2, 2)) used by scale_actions
        low=jnp.full((1, n_actions), -2.0, jnp.float32),
        high=jnp.full((1, n_actions), 2.0, jnp.float32),
    )


def pack_params(p):
    """Fuse per-layer weights into the kernel's resident fused layout.

    Matmul weights are cast to bf16 (padding columns are exact zeros, which
    bf16 represents exactly); biases and epilogue constants stay f32.
    """
    h = p["wv"].shape[1]
    a = p["log_std"].shape[-1]
    out_pad = max(LANE, _round_up(a + 1, LANE))

    # Fused feature extractor: [Wv | Wpi] -> (S, 2H)
    w_feat = jnp.concatenate([p["wv"], p["wpi"]], axis=1)
    b_feat = jnp.concatenate([p["bv"], p["bpi"]], axis=1)

    # Block-diagonal hidden layer: feat=[feat_v|feat_pi] -> hid=[h_c|h_a]
    w_hid = jnp.zeros((2 * h, 2 * h), jnp.float32)
    w_hid = w_hid.at[:h, :h].set(p["wc1"]).at[h:, h:].set(p["wa1"])
    b_hid = jnp.concatenate([p["bc1"], p["ba1"]], axis=1)

    # Packed output layer: hid -> slab (cols 0:A = mu logits, col A = value)
    w_out = jnp.zeros((2 * h, out_pad), jnp.float32)
    w_out = w_out.at[h:, :a].set(p["wa2"])            # actor from h_a
    w_out = w_out.at[:h, a:a + 1].set(p["wc2"])       # critic from h_c
    b_out = jnp.zeros((1, out_pad), jnp.float32)
    b_out = b_out.at[:, :a].set(p["ba2"]).at[:, a:a + 1].set(p["bc2"])

    # Precomputed Box-rescale constants (mu columns) + value-column mask.
    center = jnp.zeros((1, out_pad), jnp.float32)
    half = jnp.zeros((1, out_pad), jnp.float32)
    center = center.at[:, :a].set(0.5 * (p["low"] + p["high"]))
    half = half.at[:, :a].set(0.5 * (p["high"] - p["low"]))
    vmask = jnp.zeros((1, out_pad), jnp.float32).at[:, a:a + 1].set(1.0)

    return dict(
        w_feat=w_feat.astype(jnp.bfloat16), b_feat=b_feat,
        w_hid=w_hid.astype(jnp.bfloat16), b_hid=b_hid,
        w_out=w_out.astype(jnp.bfloat16), b_out=b_out,
        center=center, half=half, vmask=vmask,
        log_std=p["log_std"],
    )


# ----------------------------------------------------------------------------
# Pure-JAX reference (unfused, per-layer, f32) for a sanity check.
# ----------------------------------------------------------------------------
def reference_forward(x, p):
    fv = jnp.tanh(x @ p["wv"] + p["bv"])
    fpi = jnp.tanh(x @ p["wpi"] + p["bpi"])
    value = jnp.tanh(fv @ p["wc1"] + p["bc1"]) @ p["wc2"] + p["bc2"]
    mu = jnp.tanh(jnp.tanh(fpi @ p["wa1"] + p["ba1"]) @ p["wa2"] + p["ba2"])
    mu = p["low"] + 0.5 * (mu + 1.0) * (p["high"] - p["low"])
    std = jnp.exp(p["log_std"]) * jnp.ones_like(mu)
    return mu, std, value


if __name__ == "__main__":
    batch = 8
    state_size = 16
    hidden_size = 128
    n_actions = 4

    key = jax.random.PRNGKey(0)
    x = jax.random.normal(key, (batch, state_size), jnp.float32)

    params = make_params(state_size, hidden_size, n_actions, init_std=1.0, seed=0)
    packed = pack_params(params)

    mu, std, value = actor_critic_forward(x, packed)
    jax.block_until_ready((mu, std, value))

    mu_ref, std_ref, value_ref = reference_forward(x, params)
    assert mu.shape == (batch, n_actions)
    assert std.shape == (batch, n_actions)
    assert value.shape == (batch, 1)
    # bf16 matmul operands => loosened tolerance vs. the f32 reference.
    assert jnp.allclose(mu, mu_ref, atol=5e-2, rtol=5e-2), \
        float(jnp.max(jnp.abs(mu - mu_ref)))
    assert jnp.allclose(std, std_ref, atol=2e-5)
    assert jnp.allclose(value, value_ref, atol=5e-2, rtol=5e-2), \
        float(jnp.max(jnp.abs(value - value_ref)))

    print("KERNEL_OK")
</pallas_src>

<mosaic_0001>
module attributes {stable_mosaic.version = 11 : i64} {
  func.func @_policy_kernel(%arg0: i32, %arg1: memref<8x16xbf16, #tpu.memory_space<vmem>>, %arg2: memref<16x256xbf16, #tpu.memory_space<vmem>>, %arg3: memref<1x256xf32, #tpu.memory_space<vmem>>, %arg4: memref<256x256xbf16, #tpu.memory_space<vmem>>, %arg5: memref<1x256xf32, #tpu.memory_space<vmem>>, %arg6: memref<256x128xbf16, #tpu.memory_space<vmem>>, %arg7: memref<1x128xf32, #tpu.memory_space<vmem>>, %arg8: memref<1x128xf32, #tpu.memory_space<vmem>>, %arg9: memref<1x128xf32, #tpu.memory_space<vmem>>, %arg10: memref<1x128xf32, #tpu.memory_space<vmem>>, %arg11: memref<8x128xf32, #tpu.memory_space<vmem>>) attributes {dimension_semantics = [#tpu.dimension_semantics<parallel>], iteration_bounds = array<i64: 1>, scalar_prefetch = 0 : i64, scratch_operands = 0 : i64, tpu.core_type = #tpu.core_type<tc>, window_params = [{transform_indices = @transform_0, window_bounds = array<i64: 8, 16>}, {pipeline_mode = #tpu.pipeline_mode<synchronous>, transform_indices = @transform_1, window_bounds = array<i64: 16, 256>}, {pipeline_mode = #tpu.pipeline_mode<synchronous>, transform_indices = @transform_2, window_bounds = array<i64: 1, 256>}, {pipeline_mode = #tpu.pipeline_mode<synchronous>, transform_indices = @transform_3, window_bounds = array<i64: 256, 256>}, {pipeline_mode = #tpu.pipeline_mode<synchronous>, transform_indices = @transform_4, window_bounds = array<i64: 1, 256>}, {pipeline_mode = #tpu.pipeline_mode<synchronous>, transform_indices = @transform_5, window_bounds = array<i64: 256, 128>}, {pipeline_mode = #tpu.pipeline_mode<synchronous>, transform_indices = @transform_6, window_bounds = array<i64: 1, 128>}, {pipeline_mode = #tpu.pipeline_mode<synchronous>, transform_indices = @transform_7, window_bounds = array<i64: 1, 128>}, {pipeline_mode = #tpu.pipeline_mode<synchronous>, transform_indices = @transform_8, window_bounds = array<i64: 1, 128>}, {pipeline_mode = #tpu.pipeline_mode<synchronous>, transform_indices = @transform_9, window_bounds = array<i64: 1, 128>}, {transform_indices = @transform_10, window_bounds = array<i64: 8, 128>}]} {
    %c0 = arith.constant 0 : index
    %c0_0 = arith.constant 0 : index
    %0 = vector.load %arg1[%c0, %c0_0] : memref<8x16xbf16, #tpu.memory_space<vmem>>, vector<8x16xbf16>
    %c0_1 = arith.constant 0 : index
    %c0_2 = arith.constant 0 : index
    %1 = vector.load %arg2[%c0_1, %c0_2] : memref<16x256xbf16, #tpu.memory_space<vmem>>, vector<16x256xbf16>
    %cst = arith.constant dense<0.000000e+00> : vector<8x256xf32>
    %2 = tpu.matmul %0, %1, %cst {dimension_numbers = #tpu.dot_dimension_numbers<[1], [0], [0], [1], [0, 0, 1, 1], [], []>} : vector<8x16xbf16>, vector<16x256xbf16>, vector<8x256xf32> -> vector<8x256xf32>
    %c0_3 = arith.constant 0 : index
    %c0_4 = arith.constant 0 : index
    %3 = vector.load %arg3[%c0_3, %c0_4] : memref<1x256xf32, #tpu.memory_space<vmem>>, vector<1x256xf32>
    %4 = vector.broadcast %3 : vector<1x256xf32> to vector<8x256xf32>
    %5 = arith.addf %2, %4 : vector<8x256xf32>
    %6 = math.tanh %5 : vector<8x256xf32>
    %7 = arith.truncf %6 : vector<8x256xf32> to vector<8x256xbf16>
    %c0_5 = arith.constant 0 : index
    %c0_6 = arith.constant 0 : index
    %8 = vector.load %arg4[%c0_5, %c0_6] : memref<256x256xbf16, #tpu.memory_space<vmem>>, vector<256x256xbf16>
    %cst_7 = arith.constant dense<0.000000e+00> : vector<8x256xf32>
    %9 = tpu.matmul %7, %8, %cst_7 {dimension_numbers = #tpu.dot_dimension_numbers<[1], [0], [0], [1], [0, 0, 1, 1], [], []>} : vector<8x256xbf16>, vector<256x256xbf16>, vector<8x256xf32> -> vector<8x256xf32>
    %c0_8 = arith.constant 0 : index
    %c0_9 = arith.constant 0 : index
    %10 = vector.load %arg5[%c0_8, %c0_9] : memref<1x256xf32, #tpu.memory_space<vmem>>, vector<1x256xf32>
    %11 = vector.broadcast %10 : vector<1x256xf32> to vector<8x256xf32>
    %12 = arith.addf %9, %11 : vector<8x256xf32>
    %13 = math.tanh %12 : vector<8x256xf32>
    %14 = arith.truncf %13 : vector<8x256xf32> to vector<8x256xbf16>
    %c0_10 = arith.constant 0 : index
    %c0_11 = arith.constant 0 : index
    %15 = vector.load %arg6[%c0_10, %c0_11] : memref<256x128xbf16, #tpu.memory_space<vmem>>, vector<256x128xbf16>
    %cst_12 = arith.constant dense<0.000000e+00> : vector<8x128xf32>
    %16 = tpu.matmul %14, %15, %cst_12 {dimension_numbers = #tpu.dot_dimension_numbers<[1], [0], [0], [1], [0, 0, 1, 1], [], []>} : vector<8x256xbf16>, vector<256x128xbf16>, vector<8x128xf32> -> vector<8x128xf32>
    %c0_13 = arith.constant 0 : index
    %c0_14 = arith.constant 0 : index
    %17 = vector.load %arg7[%c0_13, %c0_14] : memref<1x128xf32, #tpu.memory_space<vmem>>, vector<1x128xf32>
    %18 = vector.broadcast %17 : vector<1x128xf32> to vector<8x128xf32>
    %19 = arith.addf %16, %18 : vector<8x128xf32>
    %c0_15 = arith.constant 0 : index
    %c0_16 = arith.constant 0 : index
    %20 = vector.load %arg8[%c0_15, %c0_16] : memref<1x128xf32, #tpu.memory_space<vmem>>, vector<1x128xf32>
    %c0_17 = arith.constant 0 : index
    %c0_18 = arith.constant 0 : index
    %21 = vector.load %arg9[%c0_17, %c0_18] : memref<1x128xf32, #tpu.memory_space<vmem>>, vector<1x128xf32>
    %22 = math.tanh %19 : vector<8x128xf32>
    %23 = vector.broadcast %21 : vector<1x128xf32> to vector<8x128xf32>
    %24 = arith.mulf %23, %22 : vector<8x128xf32>
    %25 = vector.broadcast %20 : vector<1x128xf32> to vector<8x128xf32>
    %26 = arith.addf %25, %24 : vector<8x128xf32>
    %c0_19 = arith.constant 0 : index
    %c0_20 = arith.constant 0 : index
    %27 = vector.load %arg10[%c0_19, %c0_20] : memref<1x128xf32, #tpu.memory_space<vmem>>, vector<1x128xf32>
    %28 = vector.broadcast %27 : vector<1x128xf32> to vector<8x128xf32>
    %29 = arith.mulf %28, %19 : vector<8x128xf32>
    %30 = arith.addf %26, %29 : vector<8x128xf32>
    %c0_21 = arith.constant 0 : index
    %c0_22 = arith.constant 0 : index
    %31 = vector.load %arg11[%c0_21, %c0_22] : memref<8x128xf32, #tpu.memory_space<vmem>>, vector<8x128xf32>
    tpu.vector_store %arg11[%c0_21, %c0_22], %30 {strides = array<i32>} : memref<8x128xf32, #tpu.memory_space<vmem>>, vector<8x128xf32>,
    return
  }
  func.func @transform_0(%arg0: i32) -> (i32, i32) {
    %c0_i32 = arith.constant 0 : i32
    %c0_i32_0 = arith.constant 0 : i32
    return %arg0, %c0_i32 : i32, i32
  }
  func.func @transform_1(%arg0: i32) -> (i32, i32) {
    %c0_i32 = arith.constant 0 : i32
    %c0_i32_0 = arith.constant 0 : i32
    %c0_i32_1 = arith.constant 0 : i32
    return %c0_i32, %c0_i32_0 : i32, i32
  }
  func.func @transform_2(%arg0: i32) -> (i32, i32) {
    %c0_i32 = arith.constant 0 : i32
    %c0_i32_0 = arith.constant 0 : i32
    %c0_i32_1 = arith.constant 0 : i32
    return %c0_i32, %c0_i32_0 : i32, i32
  }
  func.func @transform_3(%arg0: i32) -> (i32, i32) {
    %c0_i32 = arith.constant 0 : i32
    %c0_i32_0 = arith.constant 0 : i32
    %c0_i32_1 = arith.constant 0 : i32
    return %c0_i32, %c0_i32_0 : i32, i32
  }
  func.func @transform_4(%arg0: i32) -> (i32, i32) {
    %c0_i32 = arith.constant 0 : i32
    %c0_i32_0 = arith.constant 0 : i32
    %c0_i32_1 = arith.constant 0 : i32
    return %c0_i32, %c0_i32_0 : i32, i32
  }
  func.func @transform_5(%arg0: i32) -> (i32, i32) {
    %c0_i32 = arith.constant 0 : i32
    %c0_i32_0 = arith.constant 0 : i32
    %c0_i32_1 = arith.constant 0 : i32
    return %c0_i32, %c0_i32_0 : i32, i32
  }
  func.func @transform_6(%arg0: i32) -> (i32, i32) {
    %c0_i32 = arith.constant 0 : i32
    %c0_i32_0 = arith.constant 0 : i32
    %c0_i32_1 = arith.constant 0 : i32
    return %c0_i32, %c0_i32_0 : i32, i32
  }
  func.func @transform_7(%arg0: i32) -> (i32, i32) {
    %c0_i32 = arith.constant 0 : i32
    %c0_i32_0 = arith.constant 0 : i32
    %c0_i32_1 = arith.constant 0 : i32
    return %c0_i32, %c0_i32_0 : i32, i32
  }
  func.func @transform_8(%arg0: i32) -> (i32, i32) {
    %c0_i32 = arith.constant 0 : i32
    %c0_i32_0 = arith.constant 0 : i32
    %c0_i32_1 = arith.constant 0 : i32
    return %c0_i32, %c0_i32_0 : i32, i32
  }
  func.func @transform_9(%arg0: i32) -> (i32, i32) {
    %c0_i32 = arith.constant 0 : i32
    %c0_i32_0 = arith.constant 0 : i32
    %c0_i32_1 = arith.constant 0 : i32
    return %c0_i32, %c0_i32_0 : i32, i32
  }
  func.func @transform_10(%arg0: i32) -> (i32, i32) {
    %c0_i32 = arith.constant 0 : i32
    %c0_i32_0 = arith.constant 0 : i32
    return %arg0, %c0_i32 : i32, i32
  }
}

</mosaic_0001>

<llo_original>
// kernel: actor_critic_forward.1
$region0: #{actor_critic_forward.1}
  #allocation0 [shape = 'u32[]', space=smem, size = 0x4, offset = 0x4, fixed_abs, tag = 'smem constant byte address 0x4 - core index']
  #allocation1 [shape = 'u32[144,128]{1,0:T(1,128)}', space=vmem, size = 0x12000, scoped, tag = 'internal scratch']
  %s0 = inlined_call_operand.vmem [shape: bf16[8,16], index: 0, kind: input, shape index: {}]
  %s1 = inlined_call_operand.vmem [shape: bf16[16,256], index: 1, kind: input, shape index: {}]
  %s2 = inlined_call_operand.vmem [shape: f32[1,256], index: 2, kind: input, shape index: {}]
  %s3 = inlined_call_operand.hbm [shape: bf16[256,256], index: 3, kind: input, shape index: {}]
  %s4 = inlined_call_operand.vmem [shape: f32[1,256], index: 4, kind: input, shape index: {}]
  %s5 = inlined_call_operand.hbm [shape: bf16[256,128], index: 5, kind: input, shape index: {}]
  %s6 = inlined_call_operand.vmem [shape: f32[1,128], index: 6, kind: input, shape index: {}]
  %s7 = inlined_call_operand.vmem [shape: f32[1,128], index: 7, kind: input, shape index: {}]
  %s8 = inlined_call_operand.hbm [shape: f32[1,128], index: 8, kind: input, shape index: {}]
  %s9 = inlined_call_operand.hbm [shape: f32[1,128], index: 9, kind: input, shape index: {}]
  %s10 = inlined_call_operand.vmem [shape: f32[8,128], index: 10, kind: output, shape index: {}]
  %s11 = sld [smem:[#allocation0]]
  $region66: #{actor_critic_forward.1} parent=0
    _
  %s13 = ssub.s32 1, %s11
  %s14 = scalar_select 0, %s13, %s11
  $region1: #{actor_critic_forward.1} parent=0
    #allocation2 [shape = 'u8[131072]{0}', space=vmem, size = 0x20000, scoped, tag = 'input window, operand 3, single buffered']
    #allocation3 [shape = 's32[1]{0}', space=sflag, size = 0x4, scoped, tag = 'scoped memory for actor_critic_forward.1']
    #allocation4 [shape = 'u8[65536]{0}', space=vmem, size = 0x10000, scoped, tag = 'input window, operand 5, single buffered']
    #allocation5 [shape = 's32[1]{0}', space=sflag, size = 0x4, scoped, tag = 'scoped memory for actor_critic_forward.1']
    #allocation6 [shape = 'u8[512]{0}', space=vmem, size = 0x400, scoped, tag = 'input window, operand 8, single buffered']
    #allocation7 [shape = 'u8[512]{0}', space=vmem, size = 0x400, scoped, tag = 'input window, operand 9, single buffered']
    #allocation8 [shape = 's32[1]{0}', space=sflag, size = 0x4, scoped, tag = 'scoped memory for actor_critic_forward.1']
    %15 = vsyncpa [#allocation3], 0
    %16 = vsyncpa [#allocation5], 0
    %17 = vsyncpa [#allocation8], 0
    // Predicated region
    $region2: #{actor_critic_forward.1} parent=1 // pred_check
      _
    $region3: #{actor_critic_forward.1} parent=1 // pred_check_branch
      %19 = sbr.rel (0) target = $region5
    $region4: #{actor_critic_forward.1} parent=1 // pred_region
      _
    $region5: #{actor_critic_forward.1} parent=1 // pred_fallthru
      _
    // Predicated region
    $region6: #{actor_critic_forward.1} parent=1 // pred_check
      _
    $region7: #{actor_critic_forward.1} parent=1 // pred_check_branch
      %21 = sbr.rel (0) target = $region9
    $region8: #{actor_critic_forward.1} parent=1 // pred_region
      _
    $region9: #{actor_critic_forward.1} parent=1 // pred_fallthru
      _
    // Predicated region
    $region10: #{actor_critic_forward.1} parent=1 // pred_check
      _
    $region11: #{actor_critic_forward.1} parent=1 // pred_check_branch
      %23 = sbr.rel (0) target = $region13
    $region12: #{actor_critic_forward.1} parent=1 // pred_region
      _
    $region13: #{actor_critic_forward.1} parent=1 // pred_fallthru
      _
    // Predicated region
    $region14: #{actor_critic_forward.1} parent=1 // pred_check
      _
    $region15: #{actor_critic_forward.1} parent=1 // pred_check_branch
      %25 = sbr.rel (0) target = $region17
    $region16: #{actor_critic_forward.1} parent=1 // pred_region
      %s27 = ssub.s32 4096, 4096
      %28 = vsyncadd [#allocation3], %s27
      %s29 = sshll.u32 [#allocation2], 4
      %s30 = int_to_ptr.vmem [resolvable:$true] %s29
      %35 = dma.hbm_to_vmem [thread:$0]  %s3, 4096, %s30, [#allocation3], 128, 128, 8
    $region17: #{actor_critic_forward.1} parent=1 // pred_fallthru
      _
    // Predicated region
    $region18: #{actor_critic_forward.1} parent=1 // pred_check
      _
    $region19: #{actor_critic_forward.1} parent=1 // pred_check_branch
      %37 = sbr.rel (0) target = $region21
    $region20: #{actor_critic_forward.1} parent=1 // pred_region
      _
    $region21: #{actor_critic_forward.1} parent=1 // pred_fallthru
      _
    // Predicated region
    $region22: #{actor_critic_forward.1} parent=1 // pred_check
      _
    $region23: #{actor_critic_forward.1} parent=1 // pred_check_branch
      %39 = sbr.rel (0) target = $region25
    $region24: #{actor_critic_forward.1} parent=1 // pred_region
      %s41 = ssub.s32 2048, 2048
      %42 = vsyncadd [#allocation5], %s41
      %s43 = sshll.u32 [#allocation4], 4
      %s44 = int_to_ptr.vmem [resolvable:$true] %s43
      %49 = dma.hbm_to_vmem [thread:$0]  %s5, 2048, %s44, [#allocation5], 64, 64, 4
    $region25: #{actor_critic_forward.1} parent=1 // pred_fallthru
      _
    // Predicated region
    $region26: #{actor_critic_forward.1} parent=1 // pred_check
      _
    $region27: #{actor_critic_forward.1} parent=1 // pred_check_branch
      %51 = sbr.rel (0) target = $region29
    $region28: #{actor_critic_forward.1} parent=1 // pred_region
      _
    $region29: #{actor_critic_forward.1} parent=1 // pred_fallthru
      _
    // Predicated region
    $region30: #{actor_critic_forward.1} parent=1 // pred_check
      _
    $region31: #{actor_critic_forward.1} parent=1 // pred_check_branch
      %53 = sbr.rel (0) target = $region33
    $region32: #{actor_critic_forward.1} parent=1 // pred_region
      _
    $region33: #{actor_critic_forward.1} parent=1 // pred_fallthru
      _
    // Predicated region
    $region34: #{actor_critic_forward.1} parent=1 // pred_check
      _
    $region35: #{actor_critic_forward.1} parent=1 // pred_check_branch
      %55 = sbr.rel (0) target = $region37
    $region36: #{actor_critic_forward.1} parent=1 // pred_region
      %s57 = ssub.s32 16, 16
      %58 = vsyncadd [#allocation5], %s57
      %s60 = sshll.u32 [#allocation6], 4
      %s61 = int_to_ptr.vmem [resolvable:$true] %s60
      %63 = dma.hbm_to_vmem [thread:$0]  %s8, 16, %s61, [#allocation5]
    $region37: #{actor_critic_forward.1} parent=1 // pred_fallthru
      _
    // Predicated region
    $region38: #{actor_critic_forward.1} parent=1 // pred_check
      _
    $region39: #{actor_critic_forward.1} parent=1 // pred_check_branch
      %65 = sbr.rel (0) target = $region41
    $region40: #{actor_critic_forward.1} parent=1 // pred_region
      %s67 = ssub.s32 16, 16
      %68 = vsyncadd [#allocation8], %s67
      %s70 = sshll.u32 [#allocation7], 4
      %s71 = int_to_ptr.vmem [resolvable:$true] %s70
      %73 = dma.hbm_to_vmem [thread:$0]  %s9, 16, %s71, [#allocation8]
    $region41: #{actor_critic_forward.1} parent=1 // pred_fallthru
      _
    // Predicated region
    $region42: #{actor_critic_forward.1} parent=1 // pred_check
      _
    $region43: #{actor_critic_forward.1} parent=1 // pred_check_branch
      %75 = sbr.rel (0) target = $region45
    $region44: #{actor_critic_forward.1} parent=1 // pred_region
      %76 = dma.done [#allocation3], 4096
    $region45: #{actor_critic_forward.1} parent=1 // pred_fallthru
      _
    // Predicated region
    $region46: #{actor_critic_forward.1} parent=1 // pred_check
      _
    $region47: #{actor_critic_forward.1} parent=1 // pred_check_branch
      %78 = sbr.rel (0) target = $region49
    $region48: #{actor_critic_forward.1} parent=1 // pred_region
      %79 = dma.done [#allocation5], 2048
    $region49: #{actor_critic_forward.1} parent=1 // pred_fallthru
      _
    // Predicated region
    $region50: #{actor_critic_forward.1} parent=1 // pred_check
      _
    $region51: #{actor_critic_forward.1} parent=1 // pred_check_branch
      %81 = sbr.rel (0) target = $region53
    $region52: #{actor_critic_forward.1} parent=1 // pred_region
      %82 = dma.done [#allocation5], 16
    $region53: #{actor_critic_forward.1} parent=1 // pred_fallthru
      _
    // Predicated region
    $region54: #{actor_critic_forward.1} parent=1 // pred_check
      _
    $region55: #{actor_critic_forward.1} parent=1 // pred_check_branch
      %84 = sbr.rel (0) target = $region57
    $region56: #{actor_critic_forward.1} parent=1 // pred_region
      %85 = dma.done [#allocation8], 16
    $region57: #{actor_critic_forward.1} parent=1 // pred_fallthru
      _
    %v87 = vld [vmem:[%s0] sm:$0xf]
    %v88 = vld [vmem:[%s1] sm:$0xff]
    %v89 = vld [vmem:[%s1 + $0x8] sm:$0xff]
    %v90 = vld [vmem:[%s2] sm:$0x3]
    %v92 = vlaneseq
    %v93 = vshrl.u32 %v92, 7
    %v94 = vsub.s32 0, %v93
    %v95 = vrot.slane %v90, %v94
    %v96 = vlaneseq
    %v97 = vshrl.u32 %v96, 7
    %v98 = vsub.s32 1, %v97
    %v99 = vrot.slane %v90, %v98
    %v104 = vunpack.c.l.b16 %v88
    %v105 = vunpack.c.h.b16 %v88
    %v106 = vunpack.c.l.b16 %v89
    %v107 = vunpack.c.h.b16 %v89
    %v108 = vpack.c.b16 %v106, %v104
    %v109 = vpack.c.b16 %v107, %v105
    %vm112 = vcmask 130048
    %v114 = vsel %vm112, %v87, 0
    %116 = vmatprep.subr.bf16.mxu0 %v109
    %117 = vmatpush1.bf16.msra.mxu0 %v108
    %118 = vmatprep.subr.bf16.mxu0 0
    %119 = vmatpush1.bf16.msra.mxu0 0
    %120 = vmatprep.subr.bf16.mxu0 0
    %121 = vmatpush1.bf16.msra.mxu0 0
    %122 = vmatprep.subr.bf16.mxu0 0
    %123 = vmatpush1.bf16.msra.mxu0 0
    %124 = vmatprep.subr.bf16.mxu0 0
    %125 = vmatpush1.bf16.msra.mxu0 0
    %126 = vmatprep.subr.bf16.mxu0 0
    %127 = vmatpush1.bf16.msra.mxu0 0
    %128 = vmatprep.subr.bf16.mxu0 0
    %129 = vmatpush1.bf16.msra.mxu0 0
    %130 = vmatprep.subr.bf16.mxu0 0
    %131 = vmatpush1.bf16.msra.mxu0 0
    %132 = vmatprep.subr.bf16.mxu0 0
    %133 = vmatpush1.bf16.msra.mxu0 0
    %134 = vmatprep.subr.bf16.mxu0 0
    %135 = vmatpush1.bf16.msra.mxu0 0
    %136 = vmatprep.subr.bf16.mxu0 0
    %137 = vmatpush1.bf16.msra.mxu0 0
    %138 = vmatprep.subr.bf16.mxu0 0
    %139 = vmatpush1.bf16.msra.mxu0 0
    %140 = vmatprep.subr.bf16.mxu0 0
    %141 = vmatpush1.bf16.msra.mxu0 0
    %142 = vmatprep.subr.bf16.mxu0 0
    %143 = vmatpush1.bf16.msra.mxu0 0
    %144 = vmatprep.subr.bf16.mxu0 0
    %145 = vmatpush1.bf16.msra.mxu0 0
    %146 = vmatprep.subr.bf16.mxu0 0
    %147 = vmatpush1.bf16.msra.mxu0 0
    %148 = vmatprep.mubr.bf16.mxu0 0
    %149 = vmatmul.mubr.bf16.gmra.mrb[0].mxu0 %v114
    %v150 = vpop.f32.mrb[0].mxu0
    %v151 = vadd.f32 %v95, %v150
    %v152 = vpop.f32.mrb[0].mxu0
    %v153 = vadd.f32 %v99, %v152
    %v154 = vpop.f32.mrb[0].mxu0
    %v155 = vpop.f32.mrb[0].mxu0
    %156 = vdwg.mxu0
    %v157 = vtanh.pop %v151
    %v158 = vtanh.pop %v153
    %v159 = vpack.c.bf16 %v157, %v157
    %v160 = vpack.c.bf16 %v158, %v158
    %v161 = vld [vmem:[#allocation2] sm:$0xff]
    %v162 = vld [vmem:[#allocation2 + $0x8] sm:$0xff]
    %v163 = vld [vmem:[#allocation2 + $0x10] sm:$0xff]
    %v164 = vld [vmem:[#allocation2 + $0x18] sm:$0xff]
    %v165 = vld [vmem:[#allocation2 + $0x20] sm:$0xff]
    %v166 = vld [vmem:[#allocation2 + $0x28] sm:$0xff]
    %v167 = vld [vmem:[#allocation2 + $0x30] sm:$0xff]
    %v168 = vld [vmem:[#allocation2 + $0x38] sm:$0xff]
    %v169 = vld [vmem:[#allocation2 + $0x40] sm:$0xff]
    %v170 = vld [vmem:[#allocation2 + $0x48] sm:$0xff]
    %v171 = vld [vmem:[#allocation2 + $0x50] sm:$0xff]
    %v172 = vld [vmem:[#allocation2 + $0x58] sm:$0xff]
    %v173 = vld [vmem:[#allocation2 + $0x60] sm:$0xff]
    %v174 = vld [vmem:[#allocation2 + $0x68] sm:$0xff]
    %v175 = vld [vmem:[#allocation2 + $0x70] sm:$0xff]
    %v176 = vld [vmem:[#allocation2 + $0x78] sm:$0xff]
    %v177 = vld [vmem:[#allocation2 + $0x80] sm:$0xff]
    %v178 = vld [vmem:[#allocation2 + $0x88] sm:$0xff]
    %v179 = vld [vmem:[#allocation2 + $0x90] sm:$0xff]
    %v180 = vld [vmem:[#allocation2 + $0x98] sm:$0xff]
    %v181 = vld [vmem:[#allocation2 + $0xa0] sm:$0xff]
    %v182 = vld [vmem:[#allocation2 + $0xa8] sm:$0xff]
    %v183 = vld [vmem:[#allocation2 + $0xb0] sm:$0xff]
    %v184 = vld [vmem:[#allocation2 + $0xb8] sm:$0xff]
    %v185 = vld [vmem:[#allocation2 + $0xc0] sm:$0xff]
    %v186 = vld [vmem:[#allocation2 + $0xc8] sm:$0xff]
    %v187 = vld [vmem:[#allocation2 + $0xd0] sm:$0xff]
    %v188 = vld [vmem:[#allocation2 + $0xd8] sm:$0xff]
    %v189 = vld [vmem:[#allocation2 + $0xe0] sm:$0xff]
    %v190 = vld [vmem:[#allocation2 + $0xe8] sm:$0xff]
    %v191 = vld [vmem:[#allocation2 + $0xf0] sm:$0xff]
    %v192 = vld [vmem:[#allocation2 + $0xf8] sm:$0xff]
    %v193 = vld [vmem:[%s4] sm:$0x3]
    %v195 = vlaneseq
    %v196 = vshrl.u32 %v195, 7
    %v197 = vsub.s32 0, %v196
    %v198 = vrot.slane %v193, %v197
    %v199 = vlaneseq
    %v200 = vshrl.u32 %v199, 7
    %v201 = vsub.s32 1, %v200
    %v202 = vrot.slane %v193, %v201
    %v237 = vunpack.c.l.b16 %v161
    %v238 = vunpack.c.h.b16 %v161
    %v239 = vunpack.c.l.b16 %v162
    %v240 = vunpack.c.h.b16 %v162
    %v241 = vunpack.c.l.b16 %v163
    %v242 = vunpack.c.h.b16 %v163
    %v243 = vunpack.c.l.b16 %v164
    %v244 = vunpack.c.h.b16 %v164
    %v245 = vunpack.c.l.b16 %v165
    %v246 = vunpack.c.h.b16 %v165
    %v247 = vunpack.c.l.b16 %v166
    %v248 = vunpack.c.h.b16 %v166
    %v249 = vunpack.c.l.b16 %v167
    %v250 = vunpack.c.h.b16 %v167
    %v251 = vunpack.c.l.b16 %v168
    %v252 = vunpack.c.h.b16 %v168
    %v253 = vunpack.c.l.b16 %v169
    %v254 = vunpack.c.h.b16 %v169
    %v255 = vunpack.c.l.b16 %v170
    %v256 = vunpack.c.h.b16 %v170
    %v257 = vunpack.c.l.b16 %v171
    %v258 = vunpack.c.h.b16 %v171
    %v259 = vunpack.c.l.b16 %v172
    %v260 = vunpack.c.h.b16 %v172
    %v261 = vunpack.c.l.b16 %v173
    %v262 = vunpack.c.h.b16 %v173
    %v263 = vunpack.c.l.b16 %v174
    %v264 = vunpack.c.h.b16 %v174
    %v265 = vunpack.c.l.b16 %v175
    %v266 = vunpack.c.h.b16 %v175
    %v267 = vunpack.c.l.b16 %v176
    %v268 = vunpack.c.h.b16 %v176
    %v269 = vunpack.c.l.b16 %v177
    %v270 = vunpack.c.h.b16 %v177
    %v271 = vunpack.c.l.b16 %v178
    %v272 = vunpack.c.h.b16 %v178
    %v273 = vunpack.c.l.b16 %v179
    %v274 = vunpack.c.h.b16 %v179
    %v275 = vunpack.c.l.b16 %v180
    %v276 = vunpack.c.h.b16 %v180
    %v277 = vunpack.c.l.b16 %v181
    %v278 = vunpack.c.h.b16 %v181
    %v279 = vunpack.c.l.b16 %v182
    %v280 = vunpack.c.h.b16 %v182
    %v281 = vunpack.c.l.b16 %v183
    %v282 = vunpack.c.h.b16 %v183
    %v283 = vunpack.c.l.b16 %v184
    %v284 = vunpack.c.h.b16 %v184
    %v285 = vunpack.c.l.b16 %v185
    %v286 = vunpack.c.h.b16 %v185
    %v287 = vunpack.c.l.b16 %v186
    %v288 = vunpack.c.h.b16 %v186
    %v289 = vunpack.c.l.b16 %v187
    %v290 = vunpack.c.h.b16 %v187
    %v291 = vunpack.c.l.b16 %v188
    %v292 = vunpack.c.h.b16 %v188
    %v293 = vunpack.c.l.b16 %v189
    %v294 = vunpack.c.h.b16 %v189
    %v295 = vunpack.c.l.b16 %v190
    %v296 = vunpack.c.h.b16 %v190
    %v297 = vunpack.c.l.b16 %v191
    %v298 = vunpack.c.h.b16 %v191
    %v299 = vunpack.c.l.b16 %v192
    %v300 = vunpack.c.h.b16 %v192
    %v301 = vpack.c.b16 %v239, %v237
    %v302 = vpack.c.b16 %v240, %v238
    %v303 = vpack.c.b16 %v243, %v241
    %v304 = vpack.c.b16 %v244, %v242
    %v305 = vpack.c.b16 %v247, %v245
    %v306 = vpack.c.b16 %v248, %v246
    %v307 = vpack.c.b16 %v251, %v249
    %v308 = vpack.c.b16 %v252, %v250
    %v309 = vpack.c.b16 %v255, %v253
    %v310 = vpack.c.b16 %v256, %v254
    %v311 = vpack.c.b16 %v259, %v257
    %v312 = vpack.c.b16 %v260, %v258
    %v313 = vpack.c.b16 %v263, %v261
    %v314 = vpack.c.b16 %v264, %v262
    %v315 = vpack.c.b16 %v267, %v265
    %v316 = vpack.c.b16 %v268, %v266
    %v317 = vpack.c.b16 %v271, %v269
    %v318 = vpack.c.b16 %v272, %v270
    %v319 = vpack.c.b16 %v275, %v273
    %v320 = vpack.c.b16 %v276, %v274
    %v321 = vpack.c.b16 %v279, %v277
    %v322 = vpack.c.b16 %v280, %v278
    %v323 = vpack.c.b16 %v283, %v281
    %v324 = vpack.c.b16 %v284, %v282
    %v325 = vpack.c.b16 %v287, %v285
    %v326 = vpack.c.b16 %v288, %v286
    %v327 = vpack.c.b16 %v291, %v289
    %v328 = vpack.c.b16 %v292, %v290
    %v329 = vpack.c.b16 %v295, %v293
    %v330 = vpack.c.b16 %v296, %v294
    %v331 = vpack.c.b16 %v299, %v297
    %v332 = vpack.c.b16 %v300, %v298
    %365 = vmatprep.subr.bf16.mxu0 %v302
    %366 = vmatpush1.bf16.msra.mxu0 %v301
    %367 = vmatprep.subr.bf16.mxu0 %v304
    %368 = vmatpush1.bf16.msra.mxu0 %v303
    %369 = vmatprep.subr.bf16.mxu0 %v306
    %370 = vmatpush1.bf16.msra.mxu0 %v305
    %371 = vmatprep.subr.bf16.mxu0 %v308
    %372 = vmatpush1.bf16.msra.mxu0 %v307
    %373 = vmatprep.subr.bf16.mxu0 %v310
    %374 = vmatpush1.bf16.msra.mxu0 %v309
    %375 = vmatprep.subr.bf16.mxu0 %v312
    %376 = vmatpush1.bf16.msra.mxu0 %v311
    %377 = vmatprep.subr.bf16.mxu0 %v314
    %378 = vmatpush1.bf16.msra.mxu0 %v313
    %379 = vmatprep.subr.bf16.mxu0 %v316
    %380 = vmatpush1.bf16.msra.mxu0 %v315
    %381 = vmatprep.subr.bf16.mxu0 %v318
    %382 = vmatpush1.bf16.msra.mxu0 %v317
    %383 = vmatprep.subr.bf16.mxu0 %v320
    %384 = vmatpush1.bf16.msra.mxu0 %v319
    %385 = vmatprep.subr.bf16.mxu0 %v322
    %386 = vmatpush1.bf16.msra.mxu0 %v321
    %387 = vmatprep.subr.bf16.mxu0 %v324
    %388 = vmatpush1.bf16.msra.mxu0 %v323
    %389 = vmatprep.subr.bf16.mxu0 %v326
    %390 = vmatpush1.bf16.msra.mxu0 %v325
    %391 = vmatprep.subr.bf16.mxu0 %v328
    %392 = vmatpush1.bf16.msra.mxu0 %v327
    %393 = vmatprep.subr.bf16.mxu0 %v330
    %394 = vmatpush1.bf16.msra.mxu0 %v329
    %395 = vmatprep.subr.bf16.mxu0 %v332
    %396 = vmatpush1.bf16.msra.mxu0 %v331
    %397 = vmatprep.mubr.bf16.mxu0 %v160
    %398 = vmatmul.mubr.bf16.gmra.mrb[0].mxu0 %v159
    %v399 = vpop.f32.mrb[0].mxu0
    %v400 = vadd.f32 %v198, %v399
    %v401 = vpop.f32.mrb[0].mxu0
    %v402 = vadd.f32 %v202, %v401
    %v403 = vpop.f32.mrb[0].mxu0
    %v404 = vpop.f32.mrb[0].mxu0
    %405 = vdwg.mxu0
    %v406 = vtanh.pop %v400
    %v407 = vtanh.pop %v402
    %v408 = vpack.c.bf16 %v406, %v406
    %v409 = vpack.c.bf16 %v407, %v407
    %v410 = vld [vmem:[#allocation4] sm:$0xf]
    %v411 = vld [vmem:[#allocation4 + $0x4] sm:$0xf]
    %v412 = vld [vmem:[#allocation4 + $0x8] sm:$0xf]
    %v413 = vld [vmem:[#allocation4 + $0xc] sm:$0xf]
    %v414 = vld [vmem:[#allocation4 + $0x10] sm:$0xf]
    %v415 = vld [vmem:[#allocation4 + $0x14] sm:$0xf]
    %v416 = vld [vmem:[#allocation4 + $0x18] sm:$0xf]
    %v417 = vld [vmem:[#allocation4 + $0x1c] sm:$0xf]
    %v418 = vld [vmem:[#allocation4 + $0x20] sm:$0xf]
    %v419 = vld [vmem:[#allocation4 + $0x24] sm:$0xf]
    %v420 = vld [vmem:[#allocation4 + $0x28] sm:$0xf]
    %v421 = vld [vmem:[#allocation4 + $0x2c] sm:$0xf]
    %v422 = vld [vmem:[#allocation4 + $0x30] sm:$0xf]
    %v423 = vld [vmem:[#allocation4 + $0x34] sm:$0xf]
    %v424 = vld [vmem:[#allocation4 + $0x38] sm:$0xf]
    %v425 = vld [vmem:[#allocation4 + $0x3c] sm:$0xf]
    %v426 = vld [vmem:[#allocation4 + $0x40] sm:$0xf]
    %v427 = vld [vmem:[#allocation4 + $0x44] sm:$0xf]
    %v428 = vld [vmem:[#allocation4 + $0x48] sm:$0xf]
    %v429 = vld [vmem:[#allocation4 + $0x4c] sm:$0xf]
    %v430 = vld [vmem:[#allocation4 + $0x50] sm:$0xf]
    %v431 = vld [vmem:[#allocation4 + $0x54] sm:$0xf]
    %v432 = vld [vmem:[#allocation4 + $0x58] sm:$0xf]
    %v433 = vld [vmem:[#allocation4 + $0x5c] sm:$0xf]
    %v434 = vld [vmem:[#allocation4 + $0x60] sm:$0xf]
    %v435 = vld [vmem:[#allocation4 + $0x64] sm:$0xf]
    %v436 = vld [vmem:[#allocation4 + $0x68] sm:$0xf]
    %v437 = vld [vmem:[#allocation4 + $0x6c] sm:$0xf]
    %v438 = vld [vmem:[#allocation4 + $0x70] sm:$0xf]
    %v439 = vld [vmem:[#allocation4 + $0x74] sm:$0xf]
    %v440 = vld [vmem:[#allocation4 + $0x78] sm:$0xf]
    %v441 = vld [vmem:[#allocation4 + $0x7c] sm:$0xf]
    %v442 = vld [vmem:[%s6] sm:$0x1]
    %v444 = vlaneseq
    %v445 = vshrl.u32 %v444, 7
    %v446 = vsub.s32 0, %v445
    %v447 = vrot.slane %v442, %v446
    %v481 = vunpack.c.l.b16 %v410
    %v482 = vunpack.c.l.b16 %v411
    %v483 = vunpack.c.l.b16 %v412
    %v484 = vunpack.c.l.b16 %v413
    %v485 = vunpack.c.l.b16 %v414
    %v486 = vunpack.c.l.b16 %v415
    %v487 = vunpack.c.l.b16 %v416
    %v488 = vunpack.c.l.b16 %v417
    %v489 = vunpack.c.l.b16 %v418
    %v490 = vunpack.c.l.b16 %v419
    %v491 = vunpack.c.l.b16 %v420
    %v492 = vunpack.c.l.b16 %v421
    %v493 = vunpack.c.l.b16 %v422
    %v494 = vunpack.c.l.b16 %v423
    %v495 = vunpack.c.l.b16 %v424
    %v496 = vunpack.c.l.b16 %v425
    %v497 = vunpack.c.l.b16 %v426
    %v498 = vunpack.c.l.b16 %v427
    %v499 = vunpack.c.l.b16 %v428
    %v500 = vunpack.c.l.b16 %v429
    %v501 = vunpack.c.l.b16 %v430
    %v502 = vunpack.c.l.b16 %v431
    %v503 = vunpack.c.l.b16 %v432
    %v504 = vunpack.c.l.b16 %v433
    %v505 = vunpack.c.l.b16 %v434
    %v506 = vunpack.c.l.b16 %v435
    %v507 = vunpack.c.l.b16 %v436
    %v508 = vunpack.c.l.b16 %v437
    %v509 = vunpack.c.l.b16 %v438
    %v510 = vunpack.c.l.b16 %v439
    %v511 = vunpack.c.l.b16 %v440
    %v512 = vunpack.c.l.b16 %v441
    %v513 = vpack.c.b16 %v482, %v481
    %v514 = vpack.c.b16 %v484, %v483
    %v515 = vpack.c.b16 %v486, %v485
    %v516 = vpack.c.b16 %v488, %v487
    %v517 = vpack.c.b16 %v490, %v489
    %v518 = vpack.c.b16 %v492, %v491
    %v519 = vpack.c.b16 %v494, %v493
    %v520 = vpack.c.b16 %v496, %v495
    %v521 = vpack.c.b16 %v498, %v497
    %v522 = vpack.c.b16 %v500, %v499
    %v523 = vpack.c.b16 %v502, %v501
    %v524 = vpack.c.b16 %v504, %v503
    %v525 = vpack.c.b16 %v506, %v505
    %v526 = vpack.c.b16 %v508, %v507
    %v527 = vpack.c.b16 %v510, %v509
    %v528 = vpack.c.b16 %v512, %v511
    %545 = vmatprep.subr.bf16.mxu0 0
    %546 = vmatpush1.bf16.msra.mxu0 %v513
    %547 = vmatprep.subr.bf16.mxu0 0
    %548 = vmatpush1.bf16.msra.mxu0 %v514
    %549 = vmatprep.subr.bf16.mxu0 0
    %550 = vmatpush1.bf16.msra.mxu0 %v515
    %551 = vmatprep.subr.bf16.mxu0 0
    %552 = vmatpush1.bf16.msra.mxu0 %v516
    %553 = vmatprep.subr.bf16.mxu0 0
    %554 = vmatpush1.bf16.msra.mxu0 %v517
    %555 = vmatprep.subr.bf16.mxu0 0
    %556 = vmatpush1.bf16.msra.mxu0 %v518
    %557 = vmatprep.subr.bf16.mxu0 0
    %558 = vmatpush1.bf16.msra.mxu0 %v519
    %559 = vmatprep.subr.bf16.mxu0 0
    %560 = vmatpush1.bf16.msra.mxu0 %v520
    %561 = vmatprep.subr.bf16.mxu0 0
    %562 = vmatpush1.bf16.msra.mxu0 %v521
    %563 = vmatprep.subr.bf16.mxu0 0
    %564 = vmatpush1.bf16.msra.mxu0 %v522
    %565 = vmatprep.subr.bf16.mxu0 0
    %566 = vmatpush1.bf16.msra.mxu0 %v523
    %567 = vmatprep.subr.bf16.mxu0 0
    %568 = vmatpush1.bf16.msra.mxu0 %v524
    %569 = vmatprep.subr.bf16.mxu0 0
    %570 = vmatpush1.bf16.msra.mxu0 %v525
    %571 = vmatprep.subr.bf16.mxu0 0
    %572 = vmatpush1.bf16.msra.mxu0 %v526
    %573 = vmatprep.subr.bf16.mxu0 0
    %574 = vmatpush1.bf16.msra.mxu0 %v527
    %575 = vmatprep.subr.bf16.mxu0 0
    %576 = vmatpush1.bf16.msra.mxu0 %v528
    %577 = vmatprep.mubr.bf16.mxu0 %v409
    %578 = vmatmul.mubr.bf16.gmra.mrb[0].mxu0 %v408
    %v579 = vpop.f32.mrb[0].mxu0
    %v580 = vadd.f32 %v447, %v579
    %v581 = vpop.f32.mrb[0].mxu0
    %v582 = vpop.f32.mrb[0].mxu0
    %v583 = vpop.f32.mrb[0].mxu0
    %584 = vdwg.mxu0
    %v585 = vld [vmem:[%s7] sm:$0x1]
    %v586 = vld [vmem:[#allocation6] sm:$0x1]
    %v587 = vtanh.pop %v580
    %v589 = vlaneseq
    %v590 = vshrl.u32 %v589, 7
    %v591 = vsub.s32 0, %v590
    %v592 = vrot.slane %v586, %v591
    %v594 = vmul.f32 %v592, %v587
    %v596 = vlaneseq
    %v597 = vshrl.u32 %v596, 7
    %v598 = vsub.s32 0, %v597
    %v599 = vrot.slane %v585, %v598
    %v601 = vadd.f32 %v599, %v594
    %v602 = vld [vmem:[#allocation7] sm:$0x1]
    %v604 = vlaneseq
    %v605 = vshrl.u32 %v604, 7
    %v606 = vsub.s32 0, %v605
    %v607 = vrot.slane %v602, %v606
    %v609 = vmul.f32 %v607, %v580
    %v610 = vadd.f32 %v601, %v609
    %611 = vst [vmem:[%s10] sm:$0xff] %v610
    // Predicated region
    $region58: #{actor_critic_forward.1} parent=1 // pred_check
      _
    $region59: #{actor_critic_forward.1} parent=1 // pred_check_branch
      %613 = sbr.rel (0) target = $region61
    $region60: #{actor_critic_forward.1} parent=1 // pred_region
      _
    $region61: #{actor_critic_forward.1} parent=1 // pred_fallthru
      _
    // Predicated region
    $region62: #{actor_critic_forward.1} parent=1 // pred_check
      _
    $region63: #{actor_critic_forward.1} parent=1 // pred_check_branch
      %615 = sbr.rel (0) target = $region65
    $region64: #{actor_critic_forward.1} parent=1 // pred_region
      _
    $region65: #{actor_critic_forward.1} parent=1 // pred_fallthru
      _
    %616 = vsyncpa [#allocation3], 1
    %617 = vsyncpa [#allocation5], 1
    %618 = vsyncpa [#allocation8], 1

</llo_original>
